<compile_context>
chip_gen: v7x
topology: tpu7x:2x2x1
jax: 0.10.0
libtpu: 0.0.40
codegen_flags: <defaults>
</compile_context>

<pallas_src>
import jax
import jax.numpy as jnp
from jax.experimental import pallas as pl
from jax.experimental.pallas import tpu as pltpu


TM = 128      # node-row tile (sublane aligned, divides N_pad)
LANE = 128    # lane padding applied to every feature dimension


def _conv1_kernel(a_ref, x_ref, w1a_ref, b1a_ref, w1b_ref, b1b_ref, x1_ref):
    # agg = A'[tile] @ x   (the (1+eps)*x_i self term is already folded into A')
    agg = jnp.dot(a_ref[...], x_ref[...], preferred_element_type=jnp.float32)
    h = jnp.dot(agg.astype(jnp.bfloat16), w1a_ref[...],
                preferred_element_type=jnp.float32) + b1a_ref[...]
    h = jnp.maximum(h, 0.0)                                   # MLP hidden ReLU
    h = jnp.dot(h.astype(jnp.bfloat16), w1b_ref[...],
                preferred_element_type=jnp.float32) + b1b_ref[...]
    x1_ref[...] = jnp.maximum(h, 0.0).astype(x1_ref.dtype)    # f.relu after conv1


def _make_conv2_kernel(tm, n_valid):
    def kernel(a_ref, x1_ref, w2a_ref, b2a_ref, w2b_ref, b2b_ref,
               x2_ref, pool_ref):
        agg = jnp.dot(a_ref[...], x1_ref[...], preferred_element_type=jnp.float32)
        h = jnp.dot(agg.astype(jnp.bfloat16), w2a_ref[...],
                    preferred_element_type=jnp.float32) + b2a_ref[...]
        h = jnp.maximum(h, 0.0)
        h = jnp.dot(h.astype(jnp.bfloat16), w2b_ref[...],
                    preferred_element_type=jnp.float32) + b2b_ref[...]
        x2 = jnp.maximum(h, 0.0)                              # f.relu after conv2

        # Zero out rows that are pure padding (global row index >= n_valid) so the
        # pool partial sums (and returned node embeddings) stay exact.
        row = pl.program_id(0) * tm + jax.lax.broadcasted_iota(
            jnp.int32, x2.shape, 0)
        x2 = jnp.where(row < n_valid, x2, 0.0)
        x2_ref[...] = x2

        # Per-tile column sum written into sublane 0 of this tile's (8, LANE) slab;
        # the wrapper sums the slabs and divides by N (global_mean_pool, batch=0).
        colsum = jnp.sum(x2, axis=0, keepdims=True)           # (1, LANE)
        sub = jax.lax.broadcasted_iota(jnp.int32, pool_ref.shape, 0)
        pool_ref[...] = jnp.where(sub == 0, colsum, 0.0)
    return kernel


def gin_forward(x, edge_index, params, eps=0.0):
    """x: [N, Cin] float32; edge_index: [2, E] int32 (row 0 = src, row 1 = dst)."""
    n, cin = x.shape
    emb = params["w2b"].shape[1]

    n_pad = max(TM, ((n + TM - 1) // TM) * TM)
    grid = (n_pad // TM,)
    cp = max(LANE, ((cin + LANE - 1) // LANE) * LANE)
    h1 = LANE                          # hidden 32  -> 128 lanes
    h2 = LANE                          # hidden 64  -> 128 lanes
    ep = max(LANE, ((emb + LANE - 1) // LANE) * LANE)

    # ---- glue (plain JAX): dense adjacency with the GIN self term folded in ----
    # A'[dst, src] = #edges src->dst ; A'[i, i] += (1 + eps). bf16 keeps the integer
    # edge counts exact and halves the HBM/VMEM traffic of the streamed A-slabs.
    a = jnp.zeros((n_pad, n_pad), jnp.float32)
    a = a.at[edge_index[1], edge_index[0]].add(1.0)
    a = a.at[jnp.arange(n), jnp.arange(n)].add(1.0 + eps)
    a = a.astype(jnp.bfloat16)

    xp = jnp.zeros((n_pad, cp), jnp.bfloat16).at[:n, :cin].set(
        x.astype(jnp.bfloat16))

    def pad_w(w, r, c):
        return jnp.zeros((r, c), jnp.bfloat16).at[:w.shape[0], :w.shape[1]].set(
            w.astype(jnp.bfloat16))

    def pad_b(b, c):
        return jnp.zeros((1, c), jnp.float32).at[:, :b.shape[1]].set(
            b.astype(jnp.float32))

    w1a, b1a = pad_w(params["w1a"], cp, h1), pad_b(params["b1a"], h1)
    w1b, b1b = pad_w(params["w1b"], h1, h2), pad_b(params["b1b"], h2)
    w2a, b2a = pad_w(params["w2a"], h2, h2), pad_b(params["b2a"], h2)
    w2b, b2b = pad_w(params["w2b"], h2, ep), pad_b(params["b2b"], ep)

    cparams = pltpu.CompilerParams(
        dimension_semantics=("parallel",),      # row tiles shard across v7x's 2 TCs
        vmem_limit_bytes=64 * 1024 * 1024,      # explicit cap; fits v7x's 64 MiB VMEM
    )

    a_spec = pl.BlockSpec((TM, n_pad), lambda i: (i, 0))    # streamed adjacency slab

    def resident(shape):
        # Same block every grid step -> DMA'd once, stays VMEM-resident.
        return pl.BlockSpec(shape, lambda i: (0, 0))

    # ---- pass 1: x1 = relu(MLP1(A' @ x)) for every (padded) node row ----
    x1 = pl.pallas_call(
        _conv1_kernel,
        grid=grid,
        in_specs=[a_spec, resident((n_pad, cp)), resident((cp, h1)),
                  resident((1, h1)), resident((h1, h2)), resident((1, h2))],
        out_specs=pl.BlockSpec((TM, h2), lambda i: (i, 0)),
        out_shape=jax.ShapeDtypeStruct((n_pad, h2), jnp.bfloat16),
        compiler_params=cparams,
    )(a, xp, w1a, b1a, w1b, b1b)

    # ---- pass 2: x2 = relu(MLP2(A' @ x1)) + per-tile pool partial sums ----
    x2, pool_parts = pl.pallas_call(
        _make_conv2_kernel(TM, n),
        grid=grid,
        in_specs=[a_spec, resident((n_pad, h2)), resident((h2, h2)),
                  resident((1, h2)), resident((h2, ep)), resident((1, ep))],
        out_specs=(pl.BlockSpec((TM, ep), lambda i: (i, 0)),
                   pl.BlockSpec((8, ep), lambda i: (i, 0))),
        out_shape=(jax.ShapeDtypeStruct((n_pad, ep), jnp.float32),
                   jax.ShapeDtypeStruct((grid[0] * 8, ep), jnp.float32)),
        compiler_params=cparams,
    )(a, x1, w2a, b2a, w2b, b2b)

    node_emb = x2[:n, :emb]
    graph_emb = (jnp.sum(pool_parts, axis=0, keepdims=True) / n)[:, :emb]
    return node_emb, graph_emb


def init_params(key, in_channels, embedding_dim):
    ks = jax.random.split(key, 4)

    def lin(k, fan_in, fan_out):
        bound = 1.0 / jnp.sqrt(fan_in)
        return jax.random.uniform(k, (fan_in, fan_out), jnp.float32, -bound, bound)

    return {
        "w1a": lin(ks[0], in_channels, 32), "b1a": jnp.zeros((1, 32), jnp.float32),
        "w1b": lin(ks[1], 32, 64),          "b1b": jnp.zeros((1, 64), jnp.float32),
        "w2a": lin(ks[2], 64, 64),          "b2a": jnp.zeros((1, 64), jnp.float32),
        "w2b": lin(ks[3], 64, embedding_dim),
        "b2b": jnp.zeros((1, embedding_dim), jnp.float32),
    }


if __name__ == "__main__":
    key = jax.random.PRNGKey(0)
    N, IN_CH, EMB = 8, 4, 32

    kx, kp = jax.random.split(key)
    x = jax.random.normal(kx, (N, IN_CH), jnp.float32)
    # Deterministic small graph: bidirectional ring over 8 nodes.
    src = jnp.array([0, 1, 2, 3, 4, 5, 6, 7, 1, 2, 3, 4, 5, 6, 7, 0], jnp.int32)
    dst = jnp.array([1, 2, 3, 4, 5, 6, 7, 0, 0, 1, 2, 3, 4, 5, 6, 7], jnp.int32)
    edge_index = jnp.stack([src, dst], axis=0)

    params = init_params(kp, IN_CH, EMB)

    node_emb, graph_emb = gin_forward(x, edge_index, params)
    jax.block_until_ready((node_emb, graph_emb))

    assert node_emb.shape == (N, EMB) and graph_emb.shape == (1, EMB)
    assert bool(jnp.all(jnp.isfinite(node_emb)))
    assert bool(jnp.all(jnp.isfinite(graph_emb)))
    print("KERNEL_OK")
</pallas_src>

<mosaic_0001>
module attributes {stable_mosaic.version = 11 : i64} {
  func.func @_conv1_kernel(%arg0: i32, %arg1: memref<128x128xbf16, #tpu.memory_space<vmem>>, %arg2: memref<128x128xbf16, #tpu.memory_space<vmem>>, %arg3: memref<128x128xbf16, #tpu.memory_space<vmem>>, %arg4: memref<1x128xf32, #tpu.memory_space<vmem>>, %arg5: memref<128x128xbf16, #tpu.memory_space<vmem>>, %arg6: memref<1x128xf32, #tpu.memory_space<vmem>>, %arg7: memref<128x128xbf16, #tpu.memory_space<vmem>>) attributes {dimension_semantics = [#tpu.dimension_semantics<parallel>], iteration_bounds = array<i64: 1>, scalar_prefetch = 0 : i64, scratch_operands = 0 : i64, tpu.core_type = #tpu.core_type<tc>, window_params = [{transform_indices = @transform_0, window_bounds = array<i64: 128, 128>}, {pipeline_mode = #tpu.pipeline_mode<synchronous>, transform_indices = @transform_1, window_bounds = array<i64: 128, 128>}, {pipeline_mode = #tpu.pipeline_mode<synchronous>, transform_indices = @transform_2, window_bounds = array<i64: 128, 128>}, {pipeline_mode = #tpu.pipeline_mode<synchronous>, transform_indices = @transform_3, window_bounds = array<i64: 1, 128>}, {pipeline_mode = #tpu.pipeline_mode<synchronous>, transform_indices = @transform_4, window_bounds = array<i64: 128, 128>}, {pipeline_mode = #tpu.pipeline_mode<synchronous>, transform_indices = @transform_5, window_bounds = array<i64: 1, 128>}, {transform_indices = @transform_6, window_bounds = array<i64: 128, 128>}]} {
    %c0 = arith.constant 0 : index
    %c0_0 = arith.constant 0 : index
    %0 = vector.load %arg1[%c0, %c0_0] : memref<128x128xbf16, #tpu.memory_space<vmem>>, vector<128x128xbf16>
    %c0_1 = arith.constant 0 : index
    %c0_2 = arith.constant 0 : index
    %1 = vector.load %arg2[%c0_1, %c0_2] : memref<128x128xbf16, #tpu.memory_space<vmem>>, vector<128x128xbf16>
    %cst = arith.constant dense<0.000000e+00> : vector<128x128xf32>
    %2 = tpu.matmul %0, %1, %cst {dimension_numbers = #tpu.dot_dimension_numbers<[1], [0], [0], [1], [0, 0, 1, 1], [], []>} : vector<128x128xbf16>, vector<128x128xbf16>, vector<128x128xf32> -> vector<128x128xf32>
    %3 = arith.truncf %2 : vector<128x128xf32> to vector<128x128xbf16>
    %c0_3 = arith.constant 0 : index
    %c0_4 = arith.constant 0 : index
    %4 = vector.load %arg3[%c0_3, %c0_4] : memref<128x128xbf16, #tpu.memory_space<vmem>>, vector<128x128xbf16>
    %cst_5 = arith.constant dense<0.000000e+00> : vector<128x128xf32>
    %5 = tpu.matmul %3, %4, %cst_5 {dimension_numbers = #tpu.dot_dimension_numbers<[1], [0], [0], [1], [0, 0, 1, 1], [], []>} : vector<128x128xbf16>, vector<128x128xbf16>, vector<128x128xf32> -> vector<128x128xf32>
    %c0_6 = arith.constant 0 : index
    %c0_7 = arith.constant 0 : index
    %6 = vector.load %arg4[%c0_6, %c0_7] : memref<1x128xf32, #tpu.memory_space<vmem>>, vector<1x128xf32>
    %7 = vector.broadcast %6 : vector<1x128xf32> to vector<128x128xf32>
    %8 = arith.addf %5, %7 : vector<128x128xf32>
    %cst_8 = arith.constant 0.000000e+00 : f32
    %9 = vector.broadcast %cst_8 : f32 to vector<128x128xf32>
    %10 = arith.maximumf %8, %9 : vector<128x128xf32>
    %11 = arith.truncf %10 : vector<128x128xf32> to vector<128x128xbf16>
    %c0_9 = arith.constant 0 : index
    %c0_10 = arith.constant 0 : index
    %12 = vector.load %arg5[%c0_9, %c0_10] : memref<128x128xbf16, #tpu.memory_space<vmem>>, vector<128x128xbf16>
    %cst_11 = arith.constant dense<0.000000e+00> : vector<128x128xf32>
    %13 = tpu.matmul %11, %12, %cst_11 {dimension_numbers = #tpu.dot_dimension_numbers<[1], [0], [0], [1], [0, 0, 1, 1], [], []>} : vector<128x128xbf16>, vector<128x128xbf16>, vector<128x128xf32> -> vector<128x128xf32>
    %c0_12 = arith.constant 0 : index
    %c0_13 = arith.constant 0 : index
    %14 = vector.load %arg6[%c0_12, %c0_13] : memref<1x128xf32, #tpu.memory_space<vmem>>, vector<1x128xf32>
    %15 = vector.broadcast %14 : vector<1x128xf32> to vector<128x128xf32>
    %16 = arith.addf %13, %15 : vector<128x128xf32>
    %cst_14 = arith.constant 0.000000e+00 : f32
    %17 = vector.broadcast %cst_14 : f32 to vector<128x128xf32>
    %18 = arith.maximumf %16, %17 : vector<128x128xf32>
    %19 = arith.truncf %18 : vector<128x128xf32> to vector<128x128xbf16>
    %c0_15 = arith.constant 0 : index
    %c0_16 = arith.constant 0 : index
    %20 = vector.load %arg7[%c0_15, %c0_16] : memref<128x128xbf16, #tpu.memory_space<vmem>>, vector<128x128xbf16>
    tpu.vector_store %arg7[%c0_15, %c0_16], %19 {strides = array<i32>} : memref<128x128xbf16, #tpu.memory_space<vmem>>, vector<128x128xbf16>,
    return
  }
  func.func @transform_0(%arg0: i32) -> (i32, i32) {
    %c0_i32 = arith.constant 0 : i32
    %c0_i32_0 = arith.constant 0 : i32
    return %arg0, %c0_i32 : i32, i32
  }
  func.func @transform_1(%arg0: i32) -> (i32, i32) {
    %c0_i32 = arith.constant 0 : i32
    %c0_i32_0 = arith.constant 0 : i32
    %c0_i32_1 = arith.constant 0 : i32
    return %c0_i32, %c0_i32_0 : i32, i32
  }
  func.func @transform_2(%arg0: i32) -> (i32, i32) {
    %c0_i32 = arith.constant 0 : i32
    %c0_i32_0 = arith.constant 0 : i32
    %c0_i32_1 = arith.constant 0 : i32
    return %c0_i32, %c0_i32_0 : i32, i32
  }
  func.func @transform_3(%arg0: i32) -> (i32, i32) {
    %c0_i32 = arith.constant 0 : i32
    %c0_i32_0 = arith.constant 0 : i32
    %c0_i32_1 = arith.constant 0 : i32
    return %c0_i32, %c0_i32_0 : i32, i32
  }
  func.func @transform_4(%arg0: i32) -> (i32, i32) {
    %c0_i32 = arith.constant 0 : i32
    %c0_i32_0 = arith.constant 0 : i32
    %c0_i32_1 = arith.constant 0 : i32
    return %c0_i32, %c0_i32_0 : i32, i32
  }
  func.func @transform_5(%arg0: i32) -> (i32, i32) {
    %c0_i32 = arith.constant 0 : i32
    %c0_i32_0 = arith.constant 0 : i32
    %c0_i32_1 = arith.constant 0 : i32
    return %c0_i32, %c0_i32_0 : i32, i32
  }
  func.func @transform_6(%arg0: i32) -> (i32, i32) {
    %c0_i32 = arith.constant 0 : i32
    %c0_i32_0 = arith.constant 0 : i32
    return %arg0, %c0_i32 : i32, i32
  }
}

</mosaic_0001>

<llo_original>
// kernel: tpu_custom_call.1
$region0: #{tpu_custom_call.1}
  #allocation0 [shape = 'u32[]', space=smem, size = 0x4, offset = 0x4, fixed_abs, tag = 'smem constant byte address 0x4 - core index']
  #allocation1 [shape = 'u32[144,128]{1,0:T(1,128)}', space=vmem, size = 0x12000, scoped, tag = 'internal scratch']
  %s0 = inlined_call_operand.hbm [shape: bf16[128,128], index: 0, kind: input, shape index: {}]
  %s1 = inlined_call_operand.hbm [shape: bf16[128,128], index: 1, kind: input, shape index: {}]
  %s2 = inlined_call_operand.hbm [shape: bf16[128,128], index: 2, kind: input, shape index: {}]
  %s3 = inlined_call_operand.hbm [shape: f32[1,128], index: 3, kind: input, shape index: {}]
  %s4 = inlined_call_operand.hbm [shape: bf16[128,128], index: 4, kind: input, shape index: {}]
  %s5 = inlined_call_operand.hbm [shape: f32[1,128], index: 5, kind: input, shape index: {}]
  %s6 = inlined_call_operand.hbm [shape: bf16[128,128], index: 6, kind: output, shape index: {}]
  %s7 = sld [smem:[#allocation0]]
  $region58: #{tpu_custom_call.1} parent=0
    _
  %s9 = ssub.s32 1, %s7
  %s10 = scalar_select 0, %s9, %s7
  $region1: #{tpu_custom_call.1} parent=0
    #allocation2 [shape = 'u8[32768]{0}', space=vmem, size = 0x8000, scoped, tag = 'input window, operand 0, single buffered']
    #allocation3 [shape = 's32[1]{0}', space=sflag, size = 0x4, scoped, tag = 'scoped memory for tpu_custom_call.1']
    #allocation4 [shape = 's32[1]{0}', space=sflag, size = 0x4, scoped, tag = 'scoped memory for tpu_custom_call.1']
    #allocation5 [shape = 'u8[32768]{0}', space=vmem, size = 0x8000, scoped, tag = 'input window, operand 1, single buffered']
    #allocation6 [shape = 's32[1]{0}', space=sflag, size = 0x4, scoped, tag = 'scoped memory for tpu_custom_call.1']
    #allocation7 [shape = 'u8[32768]{0}', space=vmem, size = 0x8000, scoped, tag = 'input window, operand 2, single buffered']
    #allocation8 [shape = 'u8[512]{0}', space=vmem, size = 0x400, scoped, tag = 'input window, operand 3, single buffered']
    #allocation9 [shape = 's32[1]{0}', space=sflag, size = 0x4, scoped, tag = 'scoped memory for tpu_custom_call.1']
    #allocation10 [shape = 'u8[32768]{0}', space=vmem, size = 0x8000, scoped, tag = 'input window, operand 4, single buffered']
    #allocation11 [shape = 'u8[512]{0}', space=vmem, size = 0x400, scoped, tag = 'input window, operand 5, single buffered']
    #allocation12 [shape = 's32[1]{0}', space=sflag, size = 0x4, scoped, tag = 'scoped memory for tpu_custom_call.1']
    #allocation13 [shape = 'u8[32768]{0}', space=vmem, size = 0x8000, scoped, tag = 'output window, operand 0, single buffered']
    %11 = vsyncpa [#allocation3], 0
    %12 = vsyncpa [#allocation6], 0
    %13 = vsyncpa [#allocation9], 0
    %14 = vsyncpa [#allocation12], 0
    %15 = vsyncpa [#allocation4], 0
    // Predicated region
    $region2: #{tpu_custom_call.1} parent=1 // pred_check
      _
    $region3: #{tpu_custom_call.1} parent=1 // pred_check_branch
      %17 = sbr.rel (0) target = $region5
    $region4: #{tpu_custom_call.1} parent=1 // pred_region
      %s19 = ssub.s32 1024, 1024
      %20 = vsyncadd [#allocation3], %s19
      %s21 = sshll.u32 [#allocation2], 4
      %s22 = int_to_ptr.vmem [resolvable:$true] %s21
      %27 = dma.hbm_to_vmem [thread:$0]  %s0, 1024, %s22, [#allocation3], 64, 64, 4
    $region5: #{tpu_custom_call.1} parent=1 // pred_fallthru
      _
    // Predicated region
    $region6: #{tpu_custom_call.1} parent=1 // pred_check
      _
    $region7: #{tpu_custom_call.1} parent=1 // pred_check_branch
      %29 = sbr.rel (0) target = $region9
    $region8: #{tpu_custom_call.1} parent=1 // pred_region
      %s31 = ssub.s32 1024, 1024
      %32 = vsyncadd [#allocation6], %s31
      %s33 = sshll.u32 [#allocation5], 4
      %s34 = int_to_ptr.vmem [resolvable:$true] %s33
      %39 = dma.hbm_to_vmem [thread:$0]  %s1, 1024, %s34, [#allocation6], 64, 64, 4
    $region9: #{tpu_custom_call.1} parent=1 // pred_fallthru
      _
    // Predicated region
    $region10: #{tpu_custom_call.1} parent=1 // pred_check
      _
    $region11: #{tpu_custom_call.1} parent=1 // pred_check_branch
      %41 = sbr.rel (0) target = $region13
    $region12: #{tpu_custom_call.1} parent=1 // pred_region
      %s43 = ssub.s32 1024, 1024
      %44 = vsyncadd [#allocation6], %s43
      %s45 = sshll.u32 [#allocation7], 4
      %s46 = int_to_ptr.vmem [resolvable:$true] %s45
      %51 = dma.hbm_to_vmem [thread:$0]  %s2, 1024, %s46, [#allocation6], 64, 64, 4
    $region13: #{tpu_custom_call.1} parent=1 // pred_fallthru
      _
    // Predicated region
    $region14: #{tpu_custom_call.1} parent=1 // pred_check
      _
    $region15: #{tpu_custom_call.1} parent=1 // pred_check_branch
      %53 = sbr.rel (0) target = $region17
    $region16: #{tpu_custom_call.1} parent=1 // pred_region
      %s55 = ssub.s32 16, 16
      %56 = vsyncadd [#allocation9], %s55
      %s58 = sshll.u32 [#allocation8], 4
      %s59 = int_to_ptr.vmem [resolvable:$true] %s58
      %61 = dma.hbm_to_vmem [thread:$0]  %s3, 16, %s59, [#allocation9]
    $region17: #{tpu_custom_call.1} parent=1 // pred_fallthru
      _
    // Predicated region
    $region18: #{tpu_custom_call.1} parent=1 // pred_check
      _
    $region19: #{tpu_custom_call.1} parent=1 // pred_check_branch
      %63 = sbr.rel (0) target = $region21
    $region20: #{tpu_custom_call.1} parent=1 // pred_region
      %s65 = ssub.s32 1024, 1024
      %66 = vsyncadd [#allocation9], %s65
      %s67 = sshll.u32 [#allocation10], 4
      %s68 = int_to_ptr.vmem [resolvable:$true] %s67
      %73 = dma.hbm_to_vmem [thread:$0]  %s4, 1024, %s68, [#allocation9], 64, 64, 4
    $region21: #{tpu_custom_call.1} parent=1 // pred_fallthru
      _
    // Predicated region
    $region22: #{tpu_custom_call.1} parent=1 // pred_check
      _
    $region23: #{tpu_custom_call.1} parent=1 // pred_check_branch
      %75 = sbr.rel (0) target = $region25
    $region24: #{tpu_custom_call.1} parent=1 // pred_region
      %s77 = ssub.s32 16, 16
      %78 = vsyncadd [#allocation12], %s77
      %s80 = sshll.u32 [#allocation11], 4
      %s81 = int_to_ptr.vmem [resolvable:$true] %s80
      %83 = dma.hbm_to_vmem [thread:$0]  %s5, 16, %s81, [#allocation12]
    $region25: #{tpu_custom_call.1} parent=1 // pred_fallthru
      _
    // Predicated region
    $region26: #{tpu_custom_call.1} parent=1 // pred_check
      _
    $region27: #{tpu_custom_call.1} parent=1 // pred_check_branch
      %85 = sbr.rel (0) target = $region29
    $region28: #{tpu_custom_call.1} parent=1 // pred_region
      %86 = dma.done [#allocation3], 1024
    $region29: #{tpu_custom_call.1} parent=1 // pred_fallthru
      _
    // Predicated region
    $region30: #{tpu_custom_call.1} parent=1 // pred_check
      _
    $region31: #{tpu_custom_call.1} parent=1 // pred_check_branch
      %88 = sbr.rel (0) target = $region33
    $region32: #{tpu_custom_call.1} parent=1 // pred_region
      %89 = dma.done [#allocation6], 1024
    $region33: #{tpu_custom_call.1} parent=1 // pred_fallthru
      _
    // Predicated region
    $region34: #{tpu_custom_call.1} parent=1 // pred_check
      _
    $region35: #{tpu_custom_call.1} parent=1 // pred_check_branch
      %91 = sbr.rel (0) target = $region37
    $region36: #{tpu_custom_call.1} parent=1 // pred_region
      %92 = dma.done [#allocation6], 1024
    $region37: #{tpu_custom_call.1} parent=1 // pred_fallthru
      _
    // Predicated region
    $region38: #{tpu_custom_call.1} parent=1 // pred_check
      _
    $region39: #{tpu_custom_call.1} parent=1 // pred_check_branch
      %94 = sbr.rel (0) target = $region41
    $region40: #{tpu_custom_call.1} parent=1 // pred_region
      %95 = dma.done [#allocation9], 16
    $region41: #{tpu_custom_call.1} parent=1 // pred_fallthru
      _
    // Predicated region
    $region42: #{tpu_custom_call.1} parent=1 // pred_check
      _
    $region43: #{tpu_custom_call.1} parent=1 // pred_check_branch
      %97 = sbr.rel (0) target = $region45
    $region44: #{tpu_custom_call.1} parent=1 // pred_region
      %98 = dma.done [#allocation9], 1024
    $region45: #{tpu_custom_call.1} parent=1 // pred_fallthru
      _
    // Predicated region
    $region46: #{tpu_custom_call.1} parent=1 // pred_check
      _
    $region47: #{tpu_custom_call.1} parent=1 // pred_check_branch
      %100 = sbr.rel (0) target = $region49
    $region48: #{tpu_custom_call.1} parent=1 // pred_region
      %101 = dma.done [#allocation12], 16
    $region49: #{tpu_custom_call.1} parent=1 // pred_fallthru
      _
    %v103 = vld [vmem:[#allocation2] sm:$0xf]
    %v104 = vld [vmem:[#allocation2 + $0x4] sm:$0xf]
    %v105 = vld [vmem:[#allocation2 + $0x8] sm:$0xf]
    %v106 = vld [vmem:[#allocation2 + $0xc] sm:$0xf]
    %v107 = vld [vmem:[#allocation2 + $0x10] sm:$0xf]
    %v108 = vld [vmem:[#allocation2 + $0x14] sm:$0xf]
    %v109 = vld [vmem:[#allocation2 + $0x18] sm:$0xf]
    %v110 = vld [vmem:[#allocation2 + $0x1c] sm:$0xf]
    %v111 = vld [vmem:[#allocation2 + $0x20] sm:$0xf]
    %v112 = vld [vmem:[#allocation2 + $0x24] sm:$0xf]
    %v113 = vld [vmem:[#allocation2 + $0x28] sm:$0xf]
    %v114 = vld [vmem:[#allocation2 + $0x2c] sm:$0xf]
    %v115 = vld [vmem:[#allocation2 + $0x30] sm:$0xf]
    %v116 = vld [vmem:[#allocation2 + $0x34] sm:$0xf]
    %v117 = vld [vmem:[#allocation2 + $0x38] sm:$0xf]
    %v118 = vld [vmem:[#allocation2 + $0x3c] sm:$0xf]
    %v119 = vld [vmem:[#allocation5] sm:$0xf]
    %v120 = vld [vmem:[#allocation5 + $0x4] sm:$0xf]
    %v121 = vld [vmem:[#allocation5 + $0x8] sm:$0xf]
    %v122 = vld [vmem:[#allocation5 + $0xc] sm:$0xf]
    %v123 = vld [vmem:[#allocation5 + $0x10] sm:$0xf]
    %v124 = vld [vmem:[#allocation5 + $0x14] sm:$0xf]
    %v125 = vld [vmem:[#allocation5 + $0x18] sm:$0xf]
    %v126 = vld [vmem:[#allocation5 + $0x1c] sm:$0xf]
    %v127 = vld [vmem:[#allocation5 + $0x20] sm:$0xf]
    %v128 = vld [vmem:[#allocation5 + $0x24] sm:$0xf]
    %v129 = vld [vmem:[#allocation5 + $0x28] sm:$0xf]
    %v130 = vld [vmem:[#allocation5 + $0x2c] sm:$0xf]
    %v131 = vld [vmem:[#allocation5 + $0x30] sm:$0xf]
    %v132 = vld [vmem:[#allocation5 + $0x34] sm:$0xf]
    %v133 = vld [vmem:[#allocation5 + $0x38] sm:$0xf]
    %v134 = vld [vmem:[#allocation5 + $0x3c] sm:$0xf]
    %v151 = vunpack.c.l.b16 %v103
    %v152 = vunpack.c.l.b16 %v104
    %v153 = vunpack.c.l.b16 %v105
    %v154 = vunpack.c.l.b16 %v106
    %v155 = vunpack.c.l.b16 %v107
    %v156 = vunpack.c.l.b16 %v108
    %v157 = vunpack.c.l.b16 %v109
    %v158 = vunpack.c.l.b16 %v110
    %v159 = vunpack.c.l.b16 %v111
    %v160 = vunpack.c.l.b16 %v112
    %v161 = vunpack.c.l.b16 %v113
    %v162 = vunpack.c.l.b16 %v114
    %v163 = vunpack.c.l.b16 %v115
    %v164 = vunpack.c.l.b16 %v116
    %v165 = vunpack.c.l.b16 %v117
    %v166 = vunpack.c.l.b16 %v118
    %v167 = vpack.c.b16 %v152, %v151
    %v168 = vpack.c.b16 %v154, %v153
    %v169 = vpack.c.b16 %v156, %v155
    %v170 = vpack.c.b16 %v158, %v157
    %v171 = vpack.c.b16 %v160, %v159
    %v172 = vpack.c.b16 %v162, %v161
    %v173 = vpack.c.b16 %v164, %v163
    %v174 = vpack.c.b16 %v166, %v165
    %v199 = vunpack.c.l.b16 %v119
    %v200 = vunpack.c.l.b16 %v120
    %v201 = vunpack.c.l.b16 %v121
    %v202 = vunpack.c.l.b16 %v122
    %v203 = vunpack.c.l.b16 %v123
    %v204 = vunpack.c.l.b16 %v124
    %v205 = vunpack.c.l.b16 %v125
    %v206 = vunpack.c.l.b16 %v126
    %v207 = vunpack.c.l.b16 %v127
    %v208 = vunpack.c.l.b16 %v128
    %v209 = vunpack.c.l.b16 %v129
    %v210 = vunpack.c.l.b16 %v130
    %v211 = vunpack.c.l.b16 %v131
    %v212 = vunpack.c.l.b16 %v132
    %v213 = vunpack.c.l.b16 %v133
    %v214 = vunpack.c.l.b16 %v134
    %v215 = vpack.c.b16 %v200, %v199
    %v216 = vpack.c.b16 %v202, %v201
    %v217 = vpack.c.b16 %v204, %v203
    %v218 = vpack.c.b16 %v206, %v205
    %v219 = vpack.c.b16 %v208, %v207
    %v220 = vpack.c.b16 %v210, %v209
    %v221 = vpack.c.b16 %v212, %v211
    %v222 = vpack.c.b16 %v214, %v213
    %231 = vmatprep.subr.bf16.mxu0 0
    %232 = vmatpush1.bf16.msra.mxu0 %v215
    %233 = vmatprep.subr.bf16.mxu0 0
    %234 = vmatpush1.bf16.msra.mxu0 %v216
    %235 = vmatprep.subr.bf16.mxu0 0
    %236 = vmatpush1.bf16.msra.mxu0 %v217
    %237 = vmatprep.subr.bf16.mxu0 0
    %238 = vmatpush1.bf16.msra.mxu0 %v218
    %239 = vmatprep.subr.bf16.mxu0 0
    %240 = vmatpush1.bf16.msra.mxu0 %v219
    %241 = vmatprep.subr.bf16.mxu0 0
    %242 = vmatpush1.bf16.msra.mxu0 %v220
    %243 = vmatprep.subr.bf16.mxu0 0
    %244 = vmatpush1.bf16.msra.mxu0 %v221
    %245 = vmatprep.subr.bf16.mxu0 0
    %246 = vmatpush1.bf16.msra.mxu0 %v222
    %247 = vmatprep.subr.bf16.mxu0 0
    %248 = vmatpush1.bf16.msra.mxu0 0
    %249 = vmatprep.subr.bf16.mxu0 0
    %250 = vmatpush1.bf16.msra.mxu0 0
    %251 = vmatprep.subr.bf16.mxu0 0
    %252 = vmatpush1.bf16.msra.mxu0 0
    %253 = vmatprep.subr.bf16.mxu0 0
    %254 = vmatpush1.bf16.msra.mxu0 0
    %255 = vmatprep.subr.bf16.mxu0 0
    %256 = vmatpush1.bf16.msra.mxu0 0
    %257 = vmatprep.subr.bf16.mxu0 0
    %258 = vmatpush1.bf16.msra.mxu0 0
    %259 = vmatprep.subr.bf16.mxu0 0
    %260 = vmatpush1.bf16.msra.mxu0 0
    %261 = vmatprep.subr.bf16.mxu0 0
    %262 = vmatpush1.bf16.msra.mxu0 0
    %263 = vmatprep.mubr.bf16.mxu0 0
    %264 = vmatmul.mubr.bf16.gmra.mrb[0].mxu0 %v167
    %v265 = vpop.f32.mrb[0].mxu0
    %v266 = vadd.f32 0.0, %v265
    %v267 = vpop.f32.mrb[0].mxu0
    %v268 = vpop.f32.mrb[0].mxu0
    %v269 = vadd.f32 0.0, %v268
    %v270 = vpop.f32.mrb[0].mxu0
    %271 = vmatprep.mubr.bf16.mxu0 0
    %272 = vmatmul.mubr.bf16.gmra.mrb[0].mxu0 %v168
    %v273 = vpop.f32.mrb[0].mxu0
    %v274 = vadd.f32 0.0, %v273
    %v275 = vpop.f32.mrb[0].mxu0
    %v276 = vpop.f32.mrb[0].mxu0
    %v277 = vadd.f32 0.0, %v276
    %v278 = vpop.f32.mrb[0].mxu0
    %279 = vmatprep.mubr.bf16.mxu0 0
    %280 = vmatmul.mubr.bf16.gmra.mrb[0].mxu0 %v169
    %v281 = vpop.f32.mrb[0].mxu0
    %v282 = vadd.f32 0.0, %v281
    %v283 = vpop.f32.mrb[0].mxu0
    %v284 = vpop.f32.mrb[0].mxu0
    %v285 = vadd.f32 0.0, %v284
    %v286 = vpop.f32.mrb[0].mxu0
    %287 = vmatprep.mubr.bf16.mxu0 0
    %288 = vmatmul.mubr.bf16.gmra.mrb[0].mxu0 %v170
    %v289 = vpop.f32.mrb[0].mxu0
    %v290 = vadd.f32 0.0, %v289
    %v291 = vpop.f32.mrb[0].mxu0
    %v292 = vpop.f32.mrb[0].mxu0
    %v293 = vadd.f32 0.0, %v292
    %v294 = vpop.f32.mrb[0].mxu0
    %295 = vmatprep.mubr.bf16.mxu0 0
    %296 = vmatmul.mubr.bf16.gmra.mrb[0].mxu0 %v171
    %v297 = vpop.f32.mrb[0].mxu0
    %v298 = vadd.f32 0.0, %v297
    %v299 = vpop.f32.mrb[0].mxu0
    %v300 = vpop.f32.mrb[0].mxu0
    %v301 = vadd.f32 0.0, %v300
    %v302 = vpop.f32.mrb[0].mxu0
    %303 = vmatprep.mubr.bf16.mxu0 0
    %304 = vmatmul.mubr.bf16.gmra.mrb[0].mxu0 %v172
    %v305 = vpop.f32.mrb[0].mxu0
    %v306 = vadd.f32 0.0, %v305
    %v307 = vpop.f32.mrb[0].mxu0
    %v308 = vpop.f32.mrb[0].mxu0
    %v309 = vadd.f32 0.0, %v308
    %v310 = vpop.f32.mrb[0].mxu0
    %311 = vmatprep.mubr.bf16.mxu0 0
    %312 = vmatmul.mubr.bf16.gmra.mrb[0].mxu0 %v173
    %v313 = vpop.f32.mrb[0].mxu0
    %v314 = vadd.f32 0.0, %v313
    %v315 = vpop.f32.mrb[0].mxu0
    %v316 = vpop.f32.mrb[0].mxu0
    %v317 = vadd.f32 0.0, %v316
    %v318 = vpop.f32.mrb[0].mxu0
    %319 = vmatprep.mubr.bf16.mxu0 0
    %320 = vmatmul.mubr.bf16.gmra.mrb[0].mxu0 %v174
    %v321 = vpop.f32.mrb[0].mxu0
    %v322 = vadd.f32 0.0, %v321
    %v323 = vpop.f32.mrb[0].mxu0
    %v324 = vpop.f32.mrb[0].mxu0
    %v325 = vadd.f32 0.0, %v324
    %v326 = vpop.f32.mrb[0].mxu0
    %327 = vdwg.mxu0
    %v328 = vpack.c.bf16 %v269, %v266
    %v329 = vpack.c.bf16 %v277, %v274
    %v330 = vpack.c.bf16 %v285, %v282
    %v331 = vpack.c.bf16 %v293, %v290
    %v332 = vpack.c.bf16 %v301, %v298
    %v333 = vpack.c.bf16 %v309, %v306
    %v334 = vpack.c.bf16 %v317, %v314
    %v335 = vpack.c.bf16 %v325, %v322
    %v336 = vld [vmem:[#allocation7] sm:$0xf]
    %v337 = vld [vmem:[#allocation7 + $0x4] sm:$0xf]
    %v338 = vld [vmem:[#allocation7 + $0x8] sm:$0xf]
    %v339 = vld [vmem:[#allocation7 + $0xc] sm:$0xf]
    %v340 = vld [vmem:[#allocation7 + $0x10] sm:$0xf]
    %v341 = vld [vmem:[#allocation7 + $0x14] sm:$0xf]
    %v342 = vld [vmem:[#allocation7 + $0x18] sm:$0xf]
    %v343 = vld [vmem:[#allocation7 + $0x1c] sm:$0xf]
    %v344 = vld [vmem:[#allocation7 + $0x20] sm:$0xf]
    %v345 = vld [vmem:[#allocation7 + $0x24] sm:$0xf]
    %v346 = vld [vmem:[#allocation7 + $0x28] sm:$0xf]
    %v347 = vld [vmem:[#allocation7 + $0x2c] sm:$0xf]
    %v348 = vld [vmem:[#allocation7 + $0x30] sm:$0xf]
    %v349 = vld [vmem:[#allocation7 + $0x34] sm:$0xf]
    %v350 = vld [vmem:[#allocation7 + $0x38] sm:$0xf]
    %v351 = vld [vmem:[#allocation7 + $0x3c] sm:$0xf]
    %v352 = vld [vmem:[#allocation8] sm:$0x1]
    %v354 = vlaneseq
    %v355 = vshrl.u32 %v354, 7
    %v356 = vsub.s32 0, %v355
    %v357 = vrot.slane %v352, %v356
    %v375 = vunpack.c.l.b16 %v336
    %v376 = vunpack.c.l.b16 %v337
    %v377 = vunpack.c.l.b16 %v338
    %v378 = vunpack.c.l.b16 %v339
    %v379 = vunpack.c.l.b16 %v340
    %v380 = vunpack.c.l.b16 %v341
    %v381 = vunpack.c.l.b16 %v342
    %v382 = vunpack.c.l.b16 %v343
    %v383 = vunpack.c.l.b16 %v344
    %v384 = vunpack.c.l.b16 %v345
    %v385 = vunpack.c.l.b16 %v346
    %v386 = vunpack.c.l.b16 %v347
    %v387 = vunpack.c.l.b16 %v348
    %v388 = vunpack.c.l.b16 %v349
    %v389 = vunpack.c.l.b16 %v350
    %v390 = vunpack.c.l.b16 %v351
    %v391 = vpack.c.b16 %v376, %v375
    %v392 = vpack.c.b16 %v378, %v377
    %v393 = vpack.c.b16 %v380, %v379
    %v394 = vpack.c.b16 %v382, %v381
    %v395 = vpack.c.b16 %v384, %v383
    %v396 = vpack.c.b16 %v386, %v385
    %v397 = vpack.c.b16 %v388, %v387
    %v398 = vpack.c.b16 %v390, %v389
    %407 = vmatprep.subr.bf16.mxu0 0
    %408 = vmatpush1.bf16.msra.mxu0 %v391
    %409 = vmatprep.subr.bf16.mxu0 0
    %410 = vmatpush1.bf16.msra.mxu0 %v392
    %411 = vmatprep.subr.bf16.mxu0 0
    %412 = vmatpush1.bf16.msra.mxu0 %v393
    %413 = vmatprep.subr.bf16.mxu0 0
    %414 = vmatpush1.bf16.msra.mxu0 %v394
    %415 = vmatprep.subr.bf16.mxu0 0
    %416 = vmatpush1.bf16.msra.mxu0 %v395
    %417 = vmatprep.subr.bf16.mxu0 0
    %418 = vmatpush1.bf16.msra.mxu0 %v396
    %419 = vmatprep.subr.bf16.mxu0 0
    %420 = vmatpush1.bf16.msra.mxu0 %v397
    %421 = vmatprep.subr.bf16.mxu0 0
    %422 = vmatpush1.bf16.msra.mxu0 %v398
    %423 = vmatprep.subr.bf16.mxu0 0
    %424 = vmatpush1.bf16.msra.mxu0 0
    %425 = vmatprep.subr.bf16.mxu0 0
    %426 = vmatpush1.bf16.msra.mxu0 0
    %427 = vmatprep.subr.bf16.mxu0 0
    %428 = vmatpush1.bf16.msra.mxu0 0
    %429 = vmatprep.subr.bf16.mxu0 0
    %430 = vmatpush1.bf16.msra.mxu0 0
    %431 = vmatprep.subr.bf16.mxu0 0
    %432 = vmatpush1.bf16.msra.mxu0 0
    %433 = vmatprep.subr.bf16.mxu0 0
    %434 = vmatpush1.bf16.msra.mxu0 0
    %435 = vmatprep.subr.bf16.mxu0 0
    %436 = vmatpush1.bf16.msra.mxu0 0
    %437 = vmatprep.subr.bf16.mxu0 0
    %438 = vmatpush1.bf16.msra.mxu0 0
    %439 = vmatprep.mubr.bf16.mxu0 0
    %440 = vmatmul.mubr.bf16.gmra.mrb[0].mxu0 %v328
    %v441 = vpop.f32.mrb[0].mxu0
    %v442 = vadd.f32 %v357, %v441
    %v443 = vpop.f32.mrb[0].mxu0
    %v444 = vpop.f32.mrb[0].mxu0
    %v445 = vadd.f32 %v357, %v444
    %v446 = vpop.f32.mrb[0].mxu0
    %447 = vmatprep.mubr.bf16.mxu0 0
    %448 = vmatmul.mubr.bf16.gmra.mrb[0].mxu0 %v329
    %v449 = vpop.f32.mrb[0].mxu0
    %v450 = vadd.f32 %v357, %v449
    %v451 = vpop.f32.mrb[0].mxu0
    %v452 = vpop.f32.mrb[0].mxu0
    %v453 = vadd.f32 %v357, %v452
    %v454 = vpop.f32.mrb[0].mxu0
    %455 = vmatprep.mubr.bf16.mxu0 0
    %456 = vmatmul.mubr.bf16.gmra.mrb[0].mxu0 %v330
    %v457 = vpop.f32.mrb[0].mxu0
    %v458 = vadd.f32 %v357, %v457
    %v459 = vpop.f32.mrb[0].mxu0
    %v460 = vpop.f32.mrb[0].mxu0
    %v461 = vadd.f32 %v357, %v460
    %v462 = vpop.f32.mrb[0].mxu0
    %463 = vmatprep.mubr.bf16.mxu0 0
    %464 = vmatmul.mubr.bf16.gmra.mrb[0].mxu0 %v331
    %v465 = vpop.f32.mrb[0].mxu0
    %v466 = vadd.f32 %v357, %v465
    %v467 = vpop.f32.mrb[0].mxu0
    %v468 = vpop.f32.mrb[0].mxu0
    %v469 = vadd.f32 %v357, %v468
    %v470 = vpop.f32.mrb[0].mxu0
    %471 = vmatprep.mubr.bf16.mxu0 0
    %472 = vmatmul.mubr.bf16.gmra.mrb[0].mxu0 %v332
    %v473 = vpop.f32.mrb[0].mxu0
    %v474 = vadd.f32 %v357, %v473
    %v475 = vpop.f32.mrb[0].mxu0
    %v476 = vpop.f32.mrb[0].mxu0
    %v477 = vadd.f32 %v357, %v476
    %v478 = vpop.f32.mrb[0].mxu0
    %479 = vmatprep.mubr.bf16.mxu0 0
    %480 = vmatmul.mubr.bf16.gmra.mrb[0].mxu0 %v333
    %v481 = vpop.f32.mrb[0].mxu0
    %v482 = vadd.f32 %v357, %v481
    %v483 = vpop.f32.mrb[0].mxu0
    %v484 = vpop.f32.mrb[0].mxu0
    %v485 = vadd.f32 %v357, %v484
    %v486 = vpop.f32.mrb[0].mxu0
    %487 = vmatprep.mubr.bf16.mxu0 0
    %488 = vmatmul.mubr.bf16.gmra.mrb[0].mxu0 %v334
    %v489 = vpop.f32.mrb[0].mxu0
    %v490 = vadd.f32 %v357, %v489
    %v491 = vpop.f32.mrb[0].mxu0
    %v492 = vpop.f32.mrb[0].mxu0
    %v493 = vadd.f32 %v357, %v492
    %v494 = vpop.f32.mrb[0].mxu0
    %495 = vmatprep.mubr.bf16.mxu0 0
    %496 = vmatmul.mubr.bf16.gmra.mrb[0].mxu0 %v335
    %v497 = vpop.f32.mrb[0].mxu0
    %v498 = vadd.f32 %v357, %v497
    %v499 = vpop.f32.mrb[0].mxu0
    %v500 = vpop.f32.mrb[0].mxu0
    %v501 = vadd.f32 %v357, %v500
    %v502 = vpop.f32.mrb[0].mxu0
    %503 = vdwg.mxu0
    %v504 = vmax.f32 %v442, 0.0
    %v505 = vmax.f32 %v445, 0.0
    %v506 = vmax.f32 %v450, 0.0
    %v507 = vmax.f32 %v453, 0.0
    %v508 = vmax.f32 %v458, 0.0
    %v509 = vmax.f32 %v461, 0.0
    %v510 = vmax.f32 %v466, 0.0
    %v511 = vmax.f32 %v469, 0.0
    %v512 = vmax.f32 %v474, 0.0
    %v513 = vmax.f32 %v477, 0.0
    %v514 = vmax.f32 %v482, 0.0
    %v515 = vmax.f32 %v485, 0.0
    %v516 = vmax.f32 %v490, 0.0
    %v517 = vmax.f32 %v493, 0.0
    %v518 = vmax.f32 %v498, 0.0
    %v519 = vmax.f32 %v501, 0.0
    %v520 = vpack.c.bf16 %v505, %v504
    %v521 = vpack.c.bf16 %v507, %v506
    %v522 = vpack.c.bf16 %v509, %v508
    %v523 = vpack.c.bf16 %v511, %v510
    %v524 = vpack.c.bf16 %v513, %v512
    %v525 = vpack.c.bf16 %v515, %v514
    %v526 = vpack.c.bf16 %v517, %v516
    %v527 = vpack.c.bf16 %v519, %v518
    %v528 = vld [vmem:[#allocation10] sm:$0xf]
    %v529 = vld [vmem:[#allocation10 + $0x4] sm:$0xf]
    %v530 = vld [vmem:[#allocation10 + $0x8] sm:$0xf]
    %v531 = vld [vmem:[#allocation10 + $0xc] sm:$0xf]
    %v532 = vld [vmem:[#allocation10 + $0x10] sm:$0xf]
    %v533 = vld [vmem:[#allocation10 + $0x14] sm:$0xf]
    %v534 = vld [vmem:[#allocation10 + $0x18] sm:$0xf]
    %v535 = vld [vmem:[#allocation10 + $0x1c] sm:$0xf]
    %v536 = vld [vmem:[#allocation10 + $0x20] sm:$0xf]
    %v537 = vld [vmem:[#allocation10 + $0x24] sm:$0xf]
    %v538 = vld [vmem:[#allocation10 + $0x28] sm:$0xf]
    %v539 = vld [vmem:[#allocation10 + $0x2c] sm:$0xf]
    %v540 = vld [vmem:[#allocation10 + $0x30] sm:$0xf]
    %v541 = vld [vmem:[#allocation10 + $0x34] sm:$0xf]
    %v542 = vld [vmem:[#allocation10 + $0x38] sm:$0xf]
    %v543 = vld [vmem:[#allocation10 + $0x3c] sm:$0xf]
    %v544 = vld [vmem:[#allocation11] sm:$0x1]
    %v546 = vlaneseq
    %v547 = vshrl.u32 %v546, 7
    %v548 = vsub.s32 0, %v547
    %v549 = vrot.slane %v544, %v548
    %v567 = vunpack.c.l.b16 %v528
    %v568 = vunpack.c.l.b16 %v529
    %v569 = vunpack.c.l.b16 %v530
    %v570 = vunpack.c.l.b16 %v531
    %v571 = vunpack.c.l.b16 %v532
    %v572 = vunpack.c.l.b16 %v533
    %v573 = vunpack.c.l.b16 %v534
    %v574 = vunpack.c.l.b16 %v535
    %v575 = vunpack.c.l.b16 %v536
    %v576 = vunpack.c.l.b16 %v537
    %v577 = vunpack.c.l.b16 %v538
    %v578 = vunpack.c.l.b16 %v539
    %v579 = vunpack.c.l.b16 %v540
    %v580 = vunpack.c.l.b16 %v541
    %v581 = vunpack.c.l.b16 %v542
    %v582 = vunpack.c.l.b16 %v543
    %v583 = vpack.c.b16 %v568, %v567
    %v584 = vpack.c.b16 %v570, %v569
    %v585 = vpack.c.b16 %v572, %v571
    %v586 = vpack.c.b16 %v574, %v573
    %v587 = vpack.c.b16 %v576, %v575
    %v588 = vpack.c.b16 %v578, %v577
    %v589 = vpack.c.b16 %v580, %v579
    %v590 = vpack.c.b16 %v582, %v581
    %599 = vmatprep.subr.bf16.mxu0 0
    %600 = vmatpush1.bf16.msra.mxu0 %v583
    %601 = vmatprep.subr.bf16.mxu0 0
    %602 = vmatpush1.bf16.msra.mxu0 %v584
    %603 = vmatprep.subr.bf16.mxu0 0
    %604 = vmatpush1.bf16.msra.mxu0 %v585
    %605 = vmatprep.subr.bf16.mxu0 0
    %606 = vmatpush1.bf16.msra.mxu0 %v586
    %607 = vmatprep.subr.bf16.mxu0 0
    %608 = vmatpush1.bf16.msra.mxu0 %v587
    %609 = vmatprep.subr.bf16.mxu0 0
    %610 = vmatpush1.bf16.msra.mxu0 %v588
    %611 = vmatprep.subr.bf16.mxu0 0
    %612 = vmatpush1.bf16.msra.mxu0 %v589
    %613 = vmatprep.subr.bf16.mxu0 0
    %614 = vmatpush1.bf16.msra.mxu0 %v590
    %615 = vmatprep.subr.bf16.mxu0 0
    %616 = vmatpush1.bf16.msra.mxu0 0
    %617 = vmatprep.subr.bf16.mxu0 0
    %618 = vmatpush1.bf16.msra.mxu0 0
    %619 = vmatprep.subr.bf16.mxu0 0
    %620 = vmatpush1.bf16.msra.mxu0 0
    %621 = vmatprep.subr.bf16.mxu0 0
    %622 = vmatpush1.bf16.msra.mxu0 0
    %623 = vmatprep.subr.bf16.mxu0 0
    %624 = vmatpush1.bf16.msra.mxu0 0
    %625 = vmatprep.subr.bf16.mxu0 0
    %626 = vmatpush1.bf16.msra.mxu0 0
    %627 = vmatprep.subr.bf16.mxu0 0
    %628 = vmatpush1.bf16.msra.mxu0 0
    %629 = vmatprep.subr.bf16.mxu0 0
    %630 = vmatpush1.bf16.msra.mxu0 0
    %631 = vmatprep.mubr.bf16.mxu0 0
    %632 = vmatmul.mubr.bf16.gmra.mrb[0].mxu0 %v520
    %v633 = vpop.f32.mrb[0].mxu0
    %v634 = vadd.f32 %v549, %v633
    %v635 = vpop.f32.mrb[0].mxu0
    %v636 = vpop.f32.mrb[0].mxu0
    %v637 = vadd.f32 %v549, %v636
    %v638 = vpop.f32.mrb[0].mxu0
    %639 = vmatprep.mubr.bf16.mxu0 0
    %640 = vmatmul.mubr.bf16.gmra.mrb[0].mxu0 %v521
    %v641 = vpop.f32.mrb[0].mxu0
    %v642 = vadd.f32 %v549, %v641
    %v643 = vpop.f32.mrb[0].mxu0
    %v644 = vpop.f32.mrb[0].mxu0
    %v645 = vadd.f32 %v549, %v644
    %v646 = vpop.f32.mrb[0].mxu0
    %647 = vmatprep.mubr.bf16.mxu0 0
    %648 = vmatmul.mubr.bf16.gmra.mrb[0].mxu0 %v522
    %v649 = vpop.f32.mrb[0].mxu0
    %v650 = vadd.f32 %v549, %v649
    %v651 = vpop.f32.mrb[0].mxu0
    %v652 = vpop.f32.mrb[0].mxu0
    %v653 = vadd.f32 %v549, %v652
    %v654 = vpop.f32.mrb[0].mxu0
    %655 = vmatprep.mubr.bf16.mxu0 0
    %656 = vmatmul.mubr.bf16.gmra.mrb[0].mxu0 %v523
    %v657 = vpop.f32.mrb[0].mxu0
    %v658 = vadd.f32 %v549, %v657
    %v659 = vpop.f32.mrb[0].mxu0
    %v660 = vpop.f32.mrb[0].mxu0
    %v661 = vadd.f32 %v549, %v660
    %v662 = vpop.f32.mrb[0].mxu0
    %663 = vmatprep.mubr.bf16.mxu0 0
    %664 = vmatmul.mubr.bf16.gmra.mrb[0].mxu0 %v524
    %v665 = vpop.f32.mrb[0].mxu0
    %v666 = vadd.f32 %v549, %v665
    %v667 = vpop.f32.mrb[0].mxu0
    %v668 = vpop.f32.mrb[0].mxu0
    %v669 = vadd.f32 %v549, %v668
    %v670 = vpop.f32.mrb[0].mxu0
    %671 = vmatprep.mubr.bf16.mxu0 0
    %672 = vmatmul.mubr.bf16.gmra.mrb[0].mxu0 %v525
    %v673 = vpop.f32.mrb[0].mxu0
    %v674 = vadd.f32 %v549, %v673
    %v675 = vpop.f32.mrb[0].mxu0
    %v676 = vpop.f32.mrb[0].mxu0
    %v677 = vadd.f32 %v549, %v676
    %v678 = vpop.f32.mrb[0].mxu0
    %679 = vmatprep.mubr.bf16.mxu0 0
    %680 = vmatmul.mubr.bf16.gmra.mrb[0].mxu0 %v526
    %v681 = vpop.f32.mrb[0].mxu0
    %v682 = vadd.f32 %v549, %v681
    %v683 = vpop.f32.mrb[0].mxu0
    %v684 = vpop.f32.mrb[0].mxu0
    %v685 = vadd.f32 %v549, %v684
    %v686 = vpop.f32.mrb[0].mxu0
    %687 = vmatprep.mubr.bf16.mxu0 0
    %688 = vmatmul.mubr.bf16.gmra.mrb[0].mxu0 %v527
    %v689 = vpop.f32.mrb[0].mxu0
    %v690 = vadd.f32 %v549, %v689
    %v691 = vpop.f32.mrb[0].mxu0
    %v692 = vpop.f32.mrb[0].mxu0
    %v693 = vadd.f32 %v549, %v692
    %v694 = vpop.f32.mrb[0].mxu0
    %695 = vdwg.mxu0
    %v696 = vmax.f32 %v634, 0.0
    %v697 = vmax.f32 %v637, 0.0
    %v698 = vmax.f32 %v642, 0.0
    %v699 = vmax.f32 %v645, 0.0
    %v700 = vmax.f32 %v650, 0.0
    %v701 = vmax.f32 %v653, 0.0
    %v702 = vmax.f32 %v658, 0.0
    %v703 = vmax.f32 %v661, 0.0
    %v704 = vmax.f32 %v666, 0.0
    %v705 = vmax.f32 %v669, 0.0
    %v706 = vmax.f32 %v674, 0.0
    %v707 = vmax.f32 %v677, 0.0
    %v708 = vmax.f32 %v682, 0.0
    %v709 = vmax.f32 %v685, 0.0
    %v710 = vmax.f32 %v690, 0.0
    %v711 = vmax.f32 %v693, 0.0
    %v712 = vpack.c.bf16 %v697, %v696
    %v713 = vpack.c.bf16 %v699, %v698
    %v714 = vpack.c.bf16 %v701, %v700
    %v715 = vpack.c.bf16 %v703, %v702
    %v716 = vpack.c.bf16 %v705, %v704
    %v717 = vpack.c.bf16 %v707, %v706
    %v718 = vpack.c.bf16 %v709, %v708
    %v719 = vpack.c.bf16 %v711, %v710
    %v728 = vunpack.c.l.b16 %v712
    %v729 = vunpack.c.h.b16 %v712
    %v730 = vunpack.c.l.b16 %v713
    %v731 = vunpack.c.h.b16 %v713
    %v732 = vunpack.c.l.b16 %v714
    %v733 = vunpack.c.h.b16 %v714
    %v734 = vunpack.c.l.b16 %v715
    %v735 = vunpack.c.h.b16 %v715
    %v736 = vunpack.c.l.b16 %v716
    %v737 = vunpack.c.h.b16 %v716
    %v738 = vunpack.c.l.b16 %v717
    %v739 = vunpack.c.h.b16 %v717
    %v740 = vunpack.c.l.b16 %v718
    %v741 = vunpack.c.h.b16 %v718
    %v742 = vunpack.c.l.b16 %v719
    %v743 = vunpack.c.h.b16 %v719
    %v744 = vpack.c.b16 %v728, %v728
    %v745 = vpack.c.b16 %v729, %v729
    %v746 = vpack.c.b16 %v730, %v730
    %v747 = vpack.c.b16 %v731, %v731
    %v748 = vpack.c.b16 %v732, %v732
    %v749 = vpack.c.b16 %v733, %v733
    %v750 = vpack.c.b16 %v734, %v734
    %v751 = vpack.c.b16 %v735, %v735
    %v752 = vpack.c.b16 %v736, %v736
    %v753 = vpack.c.b16 %v737, %v737
    %v754 = vpack.c.b16 %v738, %v738
    %v755 = vpack.c.b16 %v739, %v739
    %v756 = vpack.c.b16 %v740, %v740
    %v757 = vpack.c.b16 %v741, %v741
    %v758 = vpack.c.b16 %v742, %v742
    %v759 = vpack.c.b16 %v743, %v743
    %776 = vst [vmem:[#allocation13] sm:$0xf] %v744
    %777 = vst [vmem:[#allocation13 + $0x4] sm:$0xf] %v745
    %778 = vst [vmem:[#allocation13 + $0x8] sm:$0xf] %v746
    %779 = vst [vmem:[#allocation13 + $0xc] sm:$0xf] %v747
    %780 = vst [vmem:[#allocation13 + $0x10] sm:$0xf] %v748
    %781 = vst [vmem:[#allocation13 + $0x14] sm:$0xf] %v749
    %782 = vst [vmem:[#allocation13 + $0x18] sm:$0xf] %v750
    %783 = vst [vmem:[#allocation13 + $0x1c] sm:$0xf] %v751
    %784 = vst [vmem:[#allocation13 + $0x20] sm:$0xf] %v752
    %785 = vst [vmem:[#allocation13 + $0x24] sm:$0xf] %v753
    %786 = vst [vmem:[#allocation13 + $0x28] sm:$0xf] %v754
    %787 = vst [vmem:[#allocation13 + $0x2c] sm:$0xf] %v755
    %788 = vst [vmem:[#allocation13 + $0x30] sm:$0xf] %v756
    %789 = vst [vmem:[#allocation13 + $0x34] sm:$0xf] %v757
    %790 = vst [vmem:[#allocation13 + $0x38] sm:$0xf] %v758
    %791 = vst [vmem:[#allocation13 + $0x3c] sm:$0xf] %v759
    // Predicated region
    $region50: #{tpu_custom_call.1} parent=1 // pred_check
      _
    $region51: #{tpu_custom_call.1} parent=1 // pred_check_branch
      %793 = sbr.rel (0) target = $region53
    $region52: #{tpu_custom_call.1} parent=1 // pred_region
      %s795 = ssub.s32 1024, 1024
      %796 = vsyncadd [#allocation4], %s795
      %s797 = sshll.u32 [#allocation13], 4
      %s798 = int_to_ptr.vmem [resolvable:$true] %s797
      %803 = dma.vmem_to_hbm [thread:$0]  %s798, 1024, %s6, [#allocation4], 64, 64, 4
    $region53: #{tpu_custom_call.1} parent=1 // pred_fallthru
      _
    // Predicated region
    $region54: #{tpu_custom_call.1} parent=1 // pred_check
      _
    $region55: #{tpu_custom_call.1} parent=1 // pred_check_branch
      %805 = sbr.rel (0) target = $region57
    $region56: #{tpu_custom_call.1} parent=1 // pred_region
      %806 = dma.done [#allocation4], 1024
    $region57: #{tpu_custom_call.1} parent=1 // pred_fallthru
      _
    %807 = vsyncpa [#allocation3], 1
    %808 = vsyncpa [#allocation6], 1
    %809 = vsyncpa [#allocation9], 1
    %810 = vsyncpa [#allocation12], 1
    %811 = vsyncpa [#allocation4], 1

</llo_original>
